<compile_context>
chip_gen: v6e
topology: v6e:2x2x1
jax: 0.10.0
libtpu: 0.0.40
codegen_flags: <defaults>
</compile_context>

<pallas_src>
import functools

import jax
import jax.numpy as jnp
from jax.experimental import pallas as pl
from jax.experimental.pallas import tpu as pltpu


def channel_attn_kernel(x_ref, w1t_ref, w2t_ref, o_ref, *, hw):
    # x_ref / o_ref: (TB, C, HW);  w1t: (C, C_red);  w2t: (C_red, C)

    # ---- spatial reductions over the lane axis (exact HW, no mask needed) ----
    xv = x_ref[...]
    x_sum = jnp.sum(xv, axis=-1, dtype=jnp.float32)        # (TB, C), f32 accumulation
    x_max = jnp.max(xv, axis=-1).astype(jnp.float32)       # (TB, C), reduce in native dtype
    x_avg = x_sum * (1.0 / hw)

    # ---- tiny 2-layer MLP (1x1 convs), MXU; << 1% of runtime ----------------
    w1t = w1t_ref[...]
    w2t = w2t_ref[...]

    def mlp(p):  # p: (TB, C) f32
        h = jnp.maximum(jnp.dot(p, w1t, preferred_element_type=jnp.float32), 0.0)
        return jnp.dot(h, w2t, preferred_element_type=jnp.float32)

    attn = jax.nn.sigmoid(mlp(x_avg) + mlp(x_max)).astype(o_ref.dtype)  # (TB, C)

    # ---- apply: second VMEM read of x, multiply in the input dtype ----------
    o_ref[...] = x_ref[...] * attn[:, :, None]


def _vmem_capacity_bytes():
    try:
        cap = getattr(pltpu.get_tpu_info(), "vmem_capacity_bytes", None)
        if cap:
            return int(cap)
    except Exception:
        pass
    return 64 << 20  # conservative (v7x per-TC) fallback


def channel_attn(x, w1, w2, *, batch_tile=None):
    """x: (B, C, H, W); w1: (C_red, C) fc1 1x1-conv weight; w2: (C, C_red) fc2 weight."""
    B, C, H, W = x.shape
    C_red = w1.shape[0]
    HW = H * W

    # Metadata-only reshape (contiguous dims merge); no HBM copy.
    x2 = x.reshape(B, C, HW)

    # Pre-transpose the tiny 1x1-conv weights once; they stay VMEM-resident.
    w1t = jnp.asarray(w1.T, jnp.float32)   # (C, C_red)
    w2t = jnp.asarray(w2.T, jnp.float32)   # (C_red, C)

    itemsize = x.dtype.itemsize
    slab_bytes = C * HW * itemsize
    weights_bytes = 2 * C * C_red * 4

    if batch_tile is not None:
        tb = max(1, min(int(batch_tile), B))
    else:
        # ---- generation-aware batch-tile sizing ------------------------------
        vmem_cap = _vmem_capacity_bytes()
        usable = int(vmem_cap * 0.7) - 2 * weights_bytes - (2 << 20)
        usable = max(usable, 4 * slab_bytes)                # never below one db'd slab pair
        tb = max(1, usable // (4 * slab_bytes))             # in + out, double-buffered
        tb = min(tb, B)
        # Keep enough grid steps for pipelining and v7x's 2-TC megacore sharding.
        if B >= 8:
            tb = min(tb, B // 8)
        elif B >= 4:
            tb = min(tb, B // 4)
        tb = max(tb, 1)
        # Best-effort: prefer an even step count (balanced across 2 TensorCores).
        steps = -(-B // tb)
        if steps > 1 and steps % 2 == 1 and tb > 1:
            tb_even = max(1, -(-B // (steps + 1)))
            if (-(-B // tb_even)) % 2 == 0:
                tb = tb_even

    grid = (pl.cdiv(B, tb),)

    needed = 4 * tb * slab_bytes + 2 * weights_bytes + (2 << 20)
    vmem_limit = int(min(max(needed, 32 << 20), _vmem_capacity_bytes()))
    # TODO(synk): two-pass HW-tiled variant (reduce pass + apply pass over HW tiles)
    # for activations whose single (C, HW) slab working set exceeds physical VMEM
    # (mainly v7x's 64 MiB parts at very high resolution).

    kernel = functools.partial(channel_attn_kernel, hw=HW)

    out = pl.pallas_call(
        kernel,
        out_shape=jax.ShapeDtypeStruct((B, C, HW), x.dtype),
        grid_spec=pltpu.PrefetchScalarGridSpec(
            num_scalar_prefetch=0,
            grid=grid,
            in_specs=[
                # Last two block dims equal full array dims -> (8,128) rule satisfied
                # without padding; partial final lane tile -> masked stores only.
                pl.BlockSpec((tb, C, HW), lambda b: (b, 0, 0)),
                pl.BlockSpec((C, C_red), lambda b: (0, 0)),   # resident weights
                pl.BlockSpec((C_red, C), lambda b: (0, 0)),
            ],
            out_specs=pl.BlockSpec((tb, C, HW), lambda b: (b, 0, 0)),
        ),
        compiler_params=pltpu.CompilerParams(
            dimension_semantics=("parallel",),
            vmem_limit_bytes=vmem_limit),
    )(x2, w1t, w2t)

    return out.reshape(B, C, H, W)


def channel_attn_ref(x, w1, w2):
    """Pure-JAX reference matching the PyTorch forward."""
    x_avg = x.mean((2, 3), keepdims=True)          # (B, C, 1, 1)
    x_max = x.max((2, 3), keepdims=True)           # (B, C, 1, 1)

    def mlp(p):                                    # p: (B, C, 1, 1)
        p = p[..., 0, 0]                           # (B, C)
        h = jnp.maximum(p @ w1.T, 0.0)             # (B, C_red)
        return (h @ w2.T)[..., None, None]         # (B, C, 1, 1)

    attn = jax.nn.sigmoid(mlp(x_avg) + mlp(x_max))
    return x * attn


if __name__ == "__main__":
    def run_case(key, B, C, H, W, reduction, batch_tile=None):
        C_red = max(1, C // reduction)
        kx, k1, k2 = jax.random.split(key, 3)
        x = jax.random.normal(kx, (B, C, H, W), dtype=jnp.float32)
        w1 = jax.random.normal(k1, (C_red, C), jnp.float32) * (1.0 / C) ** 0.5
        w2 = jax.random.normal(k2, (C, C_red), jnp.float32) * (1.0 / C_red) ** 0.5

        out = jax.block_until_ready(channel_attn(x, w1, w2, batch_tile=batch_tile))
        ref = jax.block_until_ready(channel_attn_ref(x, w1, w2))
        assert out.shape == (B, C, H, W)
        assert jnp.allclose(out, ref, atol=1e-5, rtol=1e-5), \
            f"mismatch vs reference for shape {(B, C, H, W)}"

    key = jax.random.PRNGKey(0)
    k1, k2, k3 = jax.random.split(key, 3)
    # ChannelAttn(channels=64, reduction=16); HW = 16*16 = 256 (lane-dense).
    run_case(k1, B=2, C=64, H=16, W=16, reduction=16)
    # Ragged spatial: C=32, H=W=7 (HW=49, partial lane tile -> masked stores),
    # B=8 exercises the multi-step pipelined path.
    run_case(k2, B=8, C=32, H=7, W=7, reduction=16)
    # Non-divisible batch: forced batch_tile=4 with B=10 -> cdiv grid of 3 steps
    # with a partial final batch block (tail handled by Pallas partial DMA).
    run_case(k3, B=10, C=32, H=7, W=7, reduction=8, batch_tile=4)

    print("KERNEL_OK")
</pallas_src>

<mosaic_0001>
module attributes {stable_mosaic.version = 11 : i64} {
  func.func @channel_attn_kernel(%arg0: i32, %arg1: memref<2x64x256xf32, #tpu.memory_space<vmem>>, %arg2: memref<64x4xf32, #tpu.memory_space<vmem>>, %arg3: memref<4x64xf32, #tpu.memory_space<vmem>>, %arg4: memref<2x64x256xf32, #tpu.memory_space<vmem>>) attributes {dimension_semantics = [#tpu.dimension_semantics<parallel>], iteration_bounds = array<i64: 1>, scalar_prefetch = 0 : i64, scratch_operands = 0 : i64, tpu.core_type = #tpu.core_type<tc>, window_params = [{transform_indices = @transform_0, window_bounds = array<i64: 2, 64, 256>}, {pipeline_mode = #tpu.pipeline_mode<synchronous>, transform_indices = @transform_1, window_bounds = array<i64: 64, 4>}, {pipeline_mode = #tpu.pipeline_mode<synchronous>, transform_indices = @transform_2, window_bounds = array<i64: 4, 64>}, {transform_indices = @transform_3, window_bounds = array<i64: 2, 64, 256>}]} {
    %c0 = arith.constant 0 : index
    %c0_0 = arith.constant 0 : index
    %c0_1 = arith.constant 0 : index
    %0 = vector.load %arg1[%c0, %c0_0, %c0_1] : memref<2x64x256xf32, #tpu.memory_space<vmem>>, vector<2x64x256xf32>
    %cst = arith.constant dense<0.000000e+00> : vector<2x64xf32>
    %1 = vector.multi_reduction <add>, %0, %cst [2] : vector<2x64x256xf32> to vector<2x64xf32>
    %cst_2 = arith.constant dense<0xFF800000> : vector<2x64xf32>
    %2 = vector.multi_reduction <maximumf>, %0, %cst_2 [2] : vector<2x64x256xf32> to vector<2x64xf32>
    %cst_3 = arith.constant 3.906250e-03 : f32
    %3 = vector.broadcast %cst_3 : f32 to vector<2x64xf32>
    %4 = arith.mulf %1, %3 : vector<2x64xf32>
    %c0_4 = arith.constant 0 : index
    %c0_5 = arith.constant 0 : index
    %5 = vector.load %arg2[%c0_4, %c0_5] : memref<64x4xf32, #tpu.memory_space<vmem>>, vector<64x4xf32>
    %c0_6 = arith.constant 0 : index
    %c0_7 = arith.constant 0 : index
    %6 = vector.load %arg3[%c0_6, %c0_7] : memref<4x64xf32, #tpu.memory_space<vmem>>, vector<4x64xf32>
    %cst_8 = arith.constant dense<0.000000e+00> : vector<2x4xf32>
    %7 = tpu.matmul %4, %5, %cst_8 {dimension_numbers = #tpu.dot_dimension_numbers<[1], [0], [0], [1], [0, 0, 1, 1], [], []>} : vector<2x64xf32>, vector<64x4xf32>, vector<2x4xf32> -> vector<2x4xf32>
    %cst_9 = arith.constant 0.000000e+00 : f32
    %8 = vector.broadcast %cst_9 : f32 to vector<2x4xf32>
    %9 = arith.maximumf %7, %8 : vector<2x4xf32>
    %cst_10 = arith.constant dense<0.000000e+00> : vector<2x64xf32>
    %10 = tpu.matmul %9, %6, %cst_10 {dimension_numbers = #tpu.dot_dimension_numbers<[1], [0], [0], [1], [0, 0, 1, 1], [], []>} : vector<2x4xf32>, vector<4x64xf32>, vector<2x64xf32> -> vector<2x64xf32>
    %cst_11 = arith.constant dense<0.000000e+00> : vector<2x4xf32>
    %11 = tpu.matmul %2, %5, %cst_11 {dimension_numbers = #tpu.dot_dimension_numbers<[1], [0], [0], [1], [0, 0, 1, 1], [], []>} : vector<2x64xf32>, vector<64x4xf32>, vector<2x4xf32> -> vector<2x4xf32>
    %cst_12 = arith.constant 0.000000e+00 : f32
    %12 = vector.broadcast %cst_12 : f32 to vector<2x4xf32>
    %13 = arith.maximumf %11, %12 : vector<2x4xf32>
    %cst_13 = arith.constant dense<0.000000e+00> : vector<2x64xf32>
    %14 = tpu.matmul %13, %6, %cst_13 {dimension_numbers = #tpu.dot_dimension_numbers<[1], [0], [0], [1], [0, 0, 1, 1], [], []>} : vector<2x4xf32>, vector<4x64xf32>, vector<2x64xf32> -> vector<2x64xf32>
    %15 = arith.addf %10, %14 : vector<2x64xf32>
    %16 = arith.negf %15 : vector<2x64xf32>
    %17 = math.exp %16 : vector<2x64xf32>
    %cst_14 = arith.constant 1.000000e+00 : f32
    %18 = vector.broadcast %cst_14 : f32 to vector<2x64xf32>
    %19 = arith.addf %18, %17 : vector<2x64xf32>
    %20 = arith.divf %18, %19 : vector<2x64xf32>
    %c0_15 = arith.constant 0 : index
    %c0_16 = arith.constant 0 : index
    %c0_17 = arith.constant 0 : index
    %21 = vector.load %arg1[%c0_15, %c0_16, %c0_17] : memref<2x64x256xf32, #tpu.memory_space<vmem>>, vector<2x64x256xf32>
    %22 = vector.shape_cast %20 : vector<2x64xf32> to vector<2x64x1xf32>
    %23 = vector.broadcast %22 : vector<2x64x1xf32> to vector<2x64x256xf32>
    %24 = arith.mulf %21, %23 : vector<2x64x256xf32>
    %c0_18 = arith.constant 0 : index
    %c0_19 = arith.constant 0 : index
    %c0_20 = arith.constant 0 : index
    %25 = vector.load %arg4[%c0_18, %c0_19, %c0_20] : memref<2x64x256xf32, #tpu.memory_space<vmem>>, vector<2x64x256xf32>
    tpu.vector_store %arg4[%c0_18, %c0_19, %c0_20], %24 {strides = array<i32>} : memref<2x64x256xf32, #tpu.memory_space<vmem>>, vector<2x64x256xf32>,
    return
  }
  func.func @transform_0(%arg0: i32) -> (i32, i32, i32) {
    %c0_i32 = arith.constant 0 : i32
    %c0_i32_0 = arith.constant 0 : i32
    %c0_i32_1 = arith.constant 0 : i32
    return %arg0, %c0_i32, %c0_i32_0 : i32, i32, i32
  }
  func.func @transform_1(%arg0: i32) -> (i32, i32) {
    %c0_i32 = arith.constant 0 : i32
    %c0_i32_0 = arith.constant 0 : i32
    %c0_i32_1 = arith.constant 0 : i32
    return %c0_i32, %c0_i32_0 : i32, i32
  }
  func.func @transform_2(%arg0: i32) -> (i32, i32) {
    %c0_i32 = arith.constant 0 : i32
    %c0_i32_0 = arith.constant 0 : i32
    %c0_i32_1 = arith.constant 0 : i32
    return %c0_i32, %c0_i32_0 : i32, i32
  }
  func.func @transform_3(%arg0: i32) -> (i32, i32, i32) {
    %c0_i32 = arith.constant 0 : i32
    %c0_i32_0 = arith.constant 0 : i32
    %c0_i32_1 = arith.constant 0 : i32
    return %arg0, %c0_i32, %c0_i32_0 : i32, i32, i32
  }
}

</mosaic_0001>

<llo_original>
// kernel: tpu_custom_call.1
$region0: #{tpu_custom_call.1}
  #allocation0 [shape = 'u32[]', space=smem, size = 0x4, offset = 0x4, fixed_abs, tag = 'smem constant byte address 0x4 - core index']
  #allocation1 [shape = 'u32[144,128]{1,0:T(1,128)}', space=vmem, size = 0x12000, scoped, tag = 'internal scratch']
  %s0 = inlined_call_operand.hbm [shape: f32[2,64,256], index: 0, kind: input, shape index: {}]
  %s1 = inlined_call_operand.vmem [shape: f32[64,4], index: 1, kind: input, shape index: {}]
  %s2 = inlined_call_operand.vmem [shape: f32[4,64], index: 2, kind: input, shape index: {}]
  %s3 = inlined_call_operand.hbm [shape: f32[2,64,256], index: 3, kind: output, shape index: {}]
  %s4 = sld [smem:[#allocation0]]
  $region26: #{tpu_custom_call.1} parent=0
    _
  %s6 = ssub.s32 1, %s4
  %s7 = scalar_select 0, %s6, %s4
  $region1: #{tpu_custom_call.1} parent=0
    #allocation2 [shape = 'u8[131072]{0}', space=vmem, size = 0x20000, scoped, tag = 'input window, operand 0, single buffered']
    #allocation3 [shape = 's32[1]{0}', space=sflag, size = 0x4, scoped, tag = 'scoped memory for tpu_custom_call.1']
    #allocation4 [shape = 's32[1]{0}', space=sflag, size = 0x4, scoped, tag = 'scoped memory for tpu_custom_call.1']
    #allocation5 [shape = 'u8[131072]{0}', space=vmem, size = 0x20000, scoped, tag = 'output window, operand 0, single buffered']
    %8 = vsyncpa [#allocation3], 0
    %9 = vsyncpa [#allocation4], 0
    // Predicated region
    $region2: #{tpu_custom_call.1} parent=1 // pred_check
      _
    $region3: #{tpu_custom_call.1} parent=1 // pred_check_branch
      %11 = sbr.rel (0) target = $region5
    $region4: #{tpu_custom_call.1} parent=1 // pred_region
      %s13 = ssub.s32 4096, 4096
      %14 = vsyncadd [#allocation3], %s13
      %s15 = sshll.u32 [#allocation2], 4
      %s16 = int_to_ptr.vmem [resolvable:$true] %s15
      %21 = dma.hbm_to_vmem [thread:$0]  %s0, 4096, %s16, [#allocation3], 256, 256, 16
    $region5: #{tpu_custom_call.1} parent=1 // pred_fallthru
      _
    // Predicated region
    $region6: #{tpu_custom_call.1} parent=1 // pred_check
      _
    $region7: #{tpu_custom_call.1} parent=1 // pred_check_branch
      %23 = sbr.rel (0) target = $region9
    $region8: #{tpu_custom_call.1} parent=1 // pred_region
      _
    $region9: #{tpu_custom_call.1} parent=1 // pred_fallthru
      _
    // Predicated region
    $region10: #{tpu_custom_call.1} parent=1 // pred_check
      _
    $region11: #{tpu_custom_call.1} parent=1 // pred_check_branch
      %25 = sbr.rel (0) target = $region13
    $region12: #{tpu_custom_call.1} parent=1 // pred_region
      _
    $region13: #{tpu_custom_call.1} parent=1 // pred_fallthru
      _
    // Predicated region
    $region14: #{tpu_custom_call.1} parent=1 // pred_check
      _
    $region15: #{tpu_custom_call.1} parent=1 // pred_check_branch
      %27 = sbr.rel (0) target = $region17
    $region16: #{tpu_custom_call.1} parent=1 // pred_region
      %28 = dma.done [#allocation3], 4096
    $region17: #{tpu_custom_call.1} parent=1 // pred_fallthru
      _
    %v29 = vld [vmem:[#allocation2] sm:$0xff]
    %v30 = vld [vmem:[#allocation2 + $0x8] sm:$0xff]
    %v31 = vld [vmem:[#allocation2 + $0x10] sm:$0xff]
    %v32 = vld [vmem:[#allocation2 + $0x18] sm:$0xff]
    %v33 = vld [vmem:[#allocation2 + $0x20] sm:$0xff]
    %v34 = vld [vmem:[#allocation2 + $0x28] sm:$0xff]
    %v35 = vld [vmem:[#allocation2 + $0x30] sm:$0xff]
    %v36 = vld [vmem:[#allocation2 + $0x38] sm:$0xff]
    %v37 = vld [vmem:[#allocation2 + $0x40] sm:$0xff]
    %v38 = vld [vmem:[#allocation2 + $0x48] sm:$0xff]
    %v39 = vld [vmem:[#allocation2 + $0x50] sm:$0xff]
    %v40 = vld [vmem:[#allocation2 + $0x58] sm:$0xff]
    %v41 = vld [vmem:[#allocation2 + $0x60] sm:$0xff]
    %v42 = vld [vmem:[#allocation2 + $0x68] sm:$0xff]
    %v43 = vld [vmem:[#allocation2 + $0x70] sm:$0xff]
    %v44 = vld [vmem:[#allocation2 + $0x78] sm:$0xff]
    %v45 = vld [vmem:[#allocation2 + $0x80] sm:$0xff]
    %v46 = vld [vmem:[#allocation2 + $0x88] sm:$0xff]
    %v47 = vld [vmem:[#allocation2 + $0x90] sm:$0xff]
    %v48 = vld [vmem:[#allocation2 + $0x98] sm:$0xff]
    %v49 = vld [vmem:[#allocation2 + $0xa0] sm:$0xff]
    %v50 = vld [vmem:[#allocation2 + $0xa8] sm:$0xff]
    %v51 = vld [vmem:[#allocation2 + $0xb0] sm:$0xff]
    %v52 = vld [vmem:[#allocation2 + $0xb8] sm:$0xff]
    %v53 = vld [vmem:[#allocation2 + $0xc0] sm:$0xff]
    %v54 = vld [vmem:[#allocation2 + $0xc8] sm:$0xff]
    %v55 = vld [vmem:[#allocation2 + $0xd0] sm:$0xff]
    %v56 = vld [vmem:[#allocation2 + $0xd8] sm:$0xff]
    %v57 = vld [vmem:[#allocation2 + $0xe0] sm:$0xff]
    %v58 = vld [vmem:[#allocation2 + $0xe8] sm:$0xff]
    %v59 = vld [vmem:[#allocation2 + $0xf0] sm:$0xff]
    %v60 = vld [vmem:[#allocation2 + $0xf8] sm:$0xff]
    %v61 = vadd.f32 %v29, %v30
    %62 = vadd.xlane.f32.xlu0 %v61
    %v63 = vpop.xlane.xlu0 %62
    %v64 = vadd.f32 %v31, %v32
    %65 = vadd.xlane.f32.xlu0 %v64
    %v66 = vpop.xlane.xlu0 %65
    %v67 = vadd.f32 %v33, %v34
    %68 = vadd.xlane.f32.xlu0 %v67
    %v69 = vpop.xlane.xlu0 %68
    %v70 = vadd.f32 %v35, %v36
    %71 = vadd.xlane.f32.xlu0 %v70
    %v72 = vpop.xlane.xlu0 %71
    %v73 = vadd.f32 %v37, %v38
    %74 = vadd.xlane.f32.xlu0 %v73
    %v75 = vpop.xlane.xlu0 %74
    %v76 = vadd.f32 %v39, %v40
    %77 = vadd.xlane.f32.xlu0 %v76
    %v78 = vpop.xlane.xlu0 %77
    %v79 = vadd.f32 %v41, %v42
    %80 = vadd.xlane.f32.xlu0 %v79
    %v81 = vpop.xlane.xlu0 %80
    %v82 = vadd.f32 %v43, %v44
    %83 = vadd.xlane.f32.xlu0 %v82
    %v84 = vpop.xlane.xlu0 %83
    %v85 = vadd.f32 %v45, %v46
    %86 = vadd.xlane.f32.xlu0 %v85
    %v87 = vpop.xlane.xlu0 %86
    %v88 = vadd.f32 %v47, %v48
    %89 = vadd.xlane.f32.xlu0 %v88
    %v90 = vpop.xlane.xlu0 %89
    %v91 = vadd.f32 %v49, %v50
    %92 = vadd.xlane.f32.xlu0 %v91
    %v93 = vpop.xlane.xlu0 %92
    %v94 = vadd.f32 %v51, %v52
    %95 = vadd.xlane.f32.xlu0 %v94
    %v96 = vpop.xlane.xlu0 %95
    %v97 = vadd.f32 %v53, %v54
    %98 = vadd.xlane.f32.xlu0 %v97
    %v99 = vpop.xlane.xlu0 %98
    %v100 = vadd.f32 %v55, %v56
    %101 = vadd.xlane.f32.xlu0 %v100
    %v102 = vpop.xlane.xlu0 %101
    %v103 = vadd.f32 %v57, %v58
    %104 = vadd.xlane.f32.xlu0 %v103
    %v105 = vpop.xlane.xlu0 %104
    %v106 = vadd.f32 %v59, %v60
    %107 = vadd.xlane.f32.xlu0 %v106
    %v108 = vpop.xlane.xlu0 %107
    %v109 = vmax.f32 %v29, %v30
    %110 = vmax.xlane.f32.xlu0 %v109
    %v111 = vpop.xlane.xlu0 %110
    %v112 = vmax.f32 %v31, %v32
    %113 = vmax.xlane.f32.xlu0 %v112
    %v114 = vpop.xlane.xlu0 %113
    %v115 = vmax.f32 %v33, %v34
    %116 = vmax.xlane.f32.xlu0 %v115
    %v117 = vpop.xlane.xlu0 %116
    %v118 = vmax.f32 %v35, %v36
    %119 = vmax.xlane.f32.xlu0 %v118
    %v120 = vpop.xlane.xlu0 %119
    %v121 = vmax.f32 %v37, %v38
    %122 = vmax.xlane.f32.xlu0 %v121
    %v123 = vpop.xlane.xlu0 %122
    %v124 = vmax.f32 %v39, %v40
    %125 = vmax.xlane.f32.xlu0 %v124
    %v126 = vpop.xlane.xlu0 %125
    %v127 = vmax.f32 %v41, %v42
    %128 = vmax.xlane.f32.xlu0 %v127
    %v129 = vpop.xlane.xlu0 %128
    %v130 = vmax.f32 %v43, %v44
    %131 = vmax.xlane.f32.xlu0 %v130
    %v132 = vpop.xlane.xlu0 %131
    %v133 = vmax.f32 %v45, %v46
    %134 = vmax.xlane.f32.xlu0 %v133
    %v135 = vpop.xlane.xlu0 %134
    %v136 = vmax.f32 %v47, %v48
    %137 = vmax.xlane.f32.xlu0 %v136
    %v138 = vpop.xlane.xlu0 %137
    %v139 = vmax.f32 %v49, %v50
    %140 = vmax.xlane.f32.xlu0 %v139
    %v141 = vpop.xlane.xlu0 %140
    %v142 = vmax.f32 %v51, %v52
    %143 = vmax.xlane.f32.xlu0 %v142
    %v144 = vpop.xlane.xlu0 %143
    %v145 = vmax.f32 %v53, %v54
    %146 = vmax.xlane.f32.xlu0 %v145
    %v147 = vpop.xlane.xlu0 %146
    %v148 = vmax.f32 %v55, %v56
    %149 = vmax.xlane.f32.xlu0 %v148
    %v150 = vpop.xlane.xlu0 %149
    %v151 = vmax.f32 %v57, %v58
    %152 = vmax.xlane.f32.xlu0 %v151
    %v153 = vpop.xlane.xlu0 %152
    %v154 = vmax.f32 %v59, %v60
    %155 = vmax.xlane.f32.xlu0 %v154
    %v156 = vpop.xlane.xlu0 %155
    %v157 = vmul.f32 %v63, 0.00390625
    %v158 = vmul.f32 %v66, 0.00390625
    %v159 = vmul.f32 %v69, 0.00390625
    %v160 = vmul.f32 %v72, 0.00390625
    %v161 = vmul.f32 %v75, 0.00390625
    %v162 = vmul.f32 %v78, 0.00390625
    %v163 = vmul.f32 %v81, 0.00390625
    %v164 = vmul.f32 %v84, 0.00390625
    %v165 = vmul.f32 %v87, 0.00390625
    %v166 = vmul.f32 %v90, 0.00390625
    %v167 = vmul.f32 %v93, 0.00390625
    %v168 = vmul.f32 %v96, 0.00390625
    %v169 = vmul.f32 %v99, 0.00390625
    %v170 = vmul.f32 %v102, 0.00390625
    %v171 = vmul.f32 %v105, 0.00390625
    %v172 = vmul.f32 %v108, 0.00390625
    %v173 = vld [vmem:[%s1] sm:$0xff]
    %v174 = vld [vmem:[%s1 + $0x8] sm:$0xff]
    %v175 = vld [vmem:[%s1 + $0x10] sm:$0xff]
    %v176 = vld [vmem:[%s1 + $0x18] sm:$0xff]
    %v177 = vld [vmem:[%s1 + $0x20] sm:$0xff]
    %v178 = vld [vmem:[%s1 + $0x28] sm:$0xff]
    %v179 = vld [vmem:[%s1 + $0x30] sm:$0xff]
    %v180 = vld [vmem:[%s1 + $0x38] sm:$0xff]
    %v181 = vld [vmem:[%s2] sm:$0xf]
    %v198 = vlaneseq
    %v199 = vand.u32 %v198, 127
    %v200 = vlaneseq
    %v201 = vshrl.u32 %v200, 7
    %v202 = vsub.s32 %v199, %v201
    %v203 = vrot.slane %v157, %v202
    %v204 = vadd.s32 %v199, 4294967288
    %v205 = vlaneseq
    %v206 = vshrl.u32 %v205, 7
    %v207 = vsub.s32 %v204, %v206
    %v208 = vrot.slane %v158, %v207
    %vm209 = vcmask 130112
    %v210 = vsel %vm209, %v208, %v203
    %v211 = vadd.s32 %v199, 4294967280
    %v212 = vlaneseq
    %v213 = vshrl.u32 %v212, 7
    %v214 = vsub.s32 %v211, %v213
    %v215 = vrot.slane %v159, %v214
    %vm216 = vcmask 195712
    %v217 = vsel %vm216, %v215, %v210
    %v218 = vadd.s32 %v199, 4294967272
    %v219 = vlaneseq
    %v220 = vshrl.u32 %v219, 7
    %v221 = vsub.s32 %v218, %v220
    %v222 = vrot.slane %v160, %v221
    %vm223 = vcmask 261312
    %v224 = vsel %vm223, %v222, %v217
    %v225 = vadd.s32 %v199, 4294967264
    %v226 = vlaneseq
    %v227 = vshrl.u32 %v226, 7
    %v228 = vsub.s32 %v225, %v227
    %v229 = vrot.slane %v161, %v228
    %vm230 = vcmask 326912
    %v231 = vsel %vm230, %v229, %v224
    %v232 = vadd.s32 %v199, 4294967256
    %v233 = vlaneseq
    %v234 = vshrl.u32 %v233, 7
    %v235 = vsub.s32 %v232, %v234
    %v236 = vrot.slane %v162, %v235
    %vm237 = vcmask 392512
    %v238 = vsel %vm237, %v236, %v231
    %v239 = vadd.s32 %v199, 4294967248
    %v240 = vlaneseq
    %v241 = vshrl.u32 %v240, 7
    %v242 = vsub.s32 %v239, %v241
    %v243 = vrot.slane %v163, %v242
    %vm244 = vcmask 458112
    %v245 = vsel %vm244, %v243, %v238
    %v246 = vadd.s32 %v199, 4294967240
    %v247 = vlaneseq
    %v248 = vshrl.u32 %v247, 7
    %v249 = vsub.s32 %v246, %v248
    %v250 = vrot.slane %v164, %v249
    %vm251 = vcmask 523712
    %v252 = vsel %vm251, %v250, %v245
    %v253 = vlaneseq
    %v254 = vshrl.u32 %v253, 7
    %v255 = vsub.s32 %v199, %v254
    %v256 = vrot.slane %v165, %v255
    %v257 = vlaneseq
    %v258 = vshrl.u32 %v257, 7
    %v259 = vsub.s32 %v204, %v258
    %v260 = vrot.slane %v166, %v259
    %v261 = vsel %vm209, %v260, %v256
    %v262 = vlaneseq
    %v263 = vshrl.u32 %v262, 7
    %v264 = vsub.s32 %v211, %v263
    %v265 = vrot.slane %v167, %v264
    %v266 = vsel %vm216, %v265, %v261
    %v267 = vlaneseq
    %v268 = vshrl.u32 %v267, 7
    %v269 = vsub.s32 %v218, %v268
    %v270 = vrot.slane %v168, %v269
    %v271 = vsel %vm223, %v270, %v266
    %v272 = vlaneseq
    %v273 = vshrl.u32 %v272, 7
    %v274 = vsub.s32 %v225, %v273
    %v275 = vrot.slane %v169, %v274
    %v276 = vsel %vm230, %v275, %v271
    %v277 = vlaneseq
    %v278 = vshrl.u32 %v277, 7
    %v279 = vsub.s32 %v232, %v278
    %v280 = vrot.slane %v170, %v279
    %v281 = vsel %vm237, %v280, %v276
    %v282 = vlaneseq
    %v283 = vshrl.u32 %v282, 7
    %v284 = vsub.s32 %v239, %v283
    %v285 = vrot.slane %v171, %v284
    %v286 = vsel %vm244, %v285, %v281
    %v287 = vlaneseq
    %v288 = vshrl.u32 %v287, 7
    %v289 = vsub.s32 %v246, %v288
    %v290 = vrot.slane %v172, %v289
    %v291 = vsel %vm251, %v290, %v286
    %vm292 = vcmask 1041409
    %v293 = vsel %vm292, %v291, %v252
    %vm294 = vcmask 523264
    %v295 = vsel %vm294, %v293, 0
    %297 = vmatprep.subr.mxu0 0.0
    %298 = vmatpush1.msra.mxu0 0.0
    %299 = vmatprep.subr.mxu0 0.0
    %300 = vmatpush1.msra.mxu0 0.0
    %301 = vmatprep.subr.mxu0 0.0
    %302 = vmatpush1.msra.mxu0 0.0
    %303 = vmatprep.subr.mxu0 0.0
    %304 = vmatpush1.msra.mxu0 0.0
    %305 = vmatprep.subr.mxu0 0.0
    %306 = vmatpush1.msra.mxu0 0.0
    %307 = vmatprep.subr.mxu0 0.0
    %308 = vmatpush1.msra.mxu0 0.0
    %309 = vmatprep.subr.mxu0 0.0
    %310 = vmatpush1.msra.mxu0 0.0
    %311 = vmatprep.subr.mxu0 0.0
    %312 = vmatpush1.msra.mxu0 0.0
    %313 = vmatprep.subr.mxu0 0.0
    %314 = vmatpush1.msra.mxu0 %v180
    %315 = vmatprep.subr.mxu0 0.0
    %316 = vmatpush1.msra.mxu0 %v179
    %317 = vmatprep.subr.mxu0 0.0
    %318 = vmatpush1.msra.mxu0 %v178
    %319 = vmatprep.subr.mxu0 0.0
    %320 = vmatpush1.msra.mxu0 %v177
    %321 = vmatprep.subr.mxu0 0.0
    %322 = vmatpush1.msra.mxu0 %v176
    %323 = vmatprep.subr.mxu0 0.0
    %324 = vmatpush1.msra.mxu0 %v175
    %325 = vmatprep.subr.mxu0 0.0
    %326 = vmatpush1.msra.mxu0 %v174
    %327 = vmatprep.subr.mxu0 0.0
    %328 = vmatpush1.msra.mxu0 %v173
    %329 = vmatprep.subr.mxu0 0.0
    %330 = vmatpush2.msra.mxu0 0.0
    %331 = vmatprep.subr.mxu0 0.0
    %332 = vmatpush2.msra.mxu0 0.0
    %333 = vmatprep.subr.mxu0 0.0
    %334 = vmatpush2.msra.mxu0 0.0
    %335 = vmatprep.subr.mxu0 0.0
    %336 = vmatpush2.msra.mxu0 0.0
    %337 = vmatprep.subr.mxu0 0.0
    %338 = vmatpush2.msra.mxu0 0.0
    %339 = vmatprep.subr.mxu0 0.0
    %340 = vmatpush2.msra.mxu0 0.0
    %341 = vmatprep.subr.mxu0 0.0
    %342 = vmatpush2.msra.mxu0 0.0
    %343 = vmatprep.subr.mxu0 0.0
    %344 = vmatpush2.msra.mxu0 0.0
    %345 = vmatprep.subr.mxu0 0.0
    %346 = vmatpush2.msra.mxu0 0.0
    %347 = vmatprep.subr.mxu0 0.0
    %348 = vmatpush2.msra.mxu0 0.0
    %349 = vmatprep.subr.mxu0 0.0
    %350 = vmatpush2.msra.mxu0 0.0
    %351 = vmatprep.subr.mxu0 0.0
    %352 = vmatpush2.msra.mxu0 0.0
    %353 = vmatprep.subr.mxu0 0.0
    %354 = vmatpush2.msra.mxu0 0.0
    %355 = vmatprep.subr.mxu0 0.0
    %356 = vmatpush2.msra.mxu0 0.0
    %357 = vmatprep.subr.mxu0 0.0
    %358 = vmatpush2.msra.mxu0 0.0
    %359 = vmatprep.subr.mxu0 0.0
    %360 = vmatpush2.msra.mxu0 0.0
    %361 = vmatprep.mubr.f32.mxu0 0.0
    %362 = vmatmul.mubr.f32.gmra.mxu0 %v295
    %v363 = vpop.f32.mrf.mxu0
    %v364 = vadd.f32 0.0, %v363
    %v365 = vpop.f32.mrf.mxu0
    %366 = vdwg.mxu0
    %v367 = vmax.f32 %v364, 0.0
    %v384 = vlaneseq
    %v385 = vshrl.u32 %v384, 7
    %v386 = vsub.s32 %v199, %v385
    %v387 = vrot.slane %v111, %v386
    %v388 = vlaneseq
    %v389 = vshrl.u32 %v388, 7
    %v390 = vsub.s32 %v204, %v389
    %v391 = vrot.slane %v114, %v390
    %v392 = vsel %vm209, %v391, %v387
    %v393 = vlaneseq
    %v394 = vshrl.u32 %v393, 7
    %v395 = vsub.s32 %v211, %v394
    %v396 = vrot.slane %v117, %v395
    %v397 = vsel %vm216, %v396, %v392
    %v398 = vlaneseq
    %v399 = vshrl.u32 %v398, 7
    %v400 = vsub.s32 %v218, %v399
    %v401 = vrot.slane %v120, %v400
    %v402 = vsel %vm223, %v401, %v397
    %v403 = vlaneseq
    %v404 = vshrl.u32 %v403, 7
    %v405 = vsub.s32 %v225, %v404
    %v406 = vrot.slane %v123, %v405
    %v407 = vsel %vm230, %v406, %v402
    %v408 = vlaneseq
    %v409 = vshrl.u32 %v408, 7
    %v410 = vsub.s32 %v232, %v409
    %v411 = vrot.slane %v126, %v410
    %v412 = vsel %vm237, %v411, %v407
    %v413 = vlaneseq
    %v414 = vshrl.u32 %v413, 7
    %v415 = vsub.s32 %v239, %v414
    %v416 = vrot.slane %v129, %v415
    %v417 = vsel %vm244, %v416, %v412
    %v418 = vlaneseq
    %v419 = vshrl.u32 %v418, 7
    %v420 = vsub.s32 %v246, %v419
    %v421 = vrot.slane %v132, %v420
    %v422 = vsel %vm251, %v421, %v417
    %v423 = vlaneseq
    %v424 = vshrl.u32 %v423, 7
    %v425 = vsub.s32 %v199, %v424
    %v426 = vrot.slane %v135, %v425
    %v427 = vlaneseq
    %v428 = vshrl.u32 %v427, 7
    %v429 = vsub.s32 %v204, %v428
    %v430 = vrot.slane %v138, %v429
    %v431 = vsel %vm209, %v430, %v426
    %v432 = vlaneseq
    %v433 = vshrl.u32 %v432, 7
    %v434 = vsub.s32 %v211, %v433
    %v435 = vrot.slane %v141, %v434
    %v436 = vsel %vm216, %v435, %v431
    %v437 = vlaneseq
    %v438 = vshrl.u32 %v437, 7
    %v439 = vsub.s32 %v218, %v438
    %v440 = vrot.slane %v144, %v439
    %v441 = vsel %vm223, %v440, %v436
    %v442 = vlaneseq
    %v443 = vshrl.u32 %v442, 7
    %v444 = vsub.s32 %v225, %v443
    %v445 = vrot.slane %v147, %v444
    %v446 = vsel %vm230, %v445, %v441
    %v447 = vlaneseq
    %v448 = vshrl.u32 %v447, 7
    %v449 = vsub.s32 %v232, %v448
    %v450 = vrot.slane %v150, %v449
    %v451 = vsel %vm237, %v450, %v446
    %v452 = vlaneseq
    %v453 = vshrl.u32 %v452, 7
    %v454 = vsub.s32 %v239, %v453
    %v455 = vrot.slane %v153, %v454
    %v456 = vsel %vm244, %v455, %v451
    %v457 = vlaneseq
    %v458 = vshrl.u32 %v457, 7
    %v459 = vsub.s32 %v246, %v458
    %v460 = vrot.slane %v156, %v459
    %v461 = vsel %vm251, %v460, %v456
    %v462 = vsel %vm292, %v461, %v422
    %v463 = vsel %vm294, %v462, 0
    %465 = vmatprep.subr.mxu0 0.0
    %466 = vmatpush1.msra.mxu0 0.0
    %467 = vmatprep.subr.mxu0 0.0
    %468 = vmatpush1.msra.mxu0 0.0
    %469 = vmatprep.subr.mxu0 0.0
    %470 = vmatpush1.msra.mxu0 0.0
    %471 = vmatprep.subr.mxu0 0.0
    %472 = vmatpush1.msra.mxu0 0.0
    %473 = vmatprep.subr.mxu0 0.0
    %474 = vmatpush1.msra.mxu0 0.0
    %475 = vmatprep.subr.mxu0 0.0
    %476 = vmatpush1.msra.mxu0 0.0
    %477 = vmatprep.subr.mxu0 0.0
    %478 = vmatpush1.msra.mxu0 0.0
    %479 = vmatprep.subr.mxu0 0.0
    %480 = vmatpush1.msra.mxu0 0.0
    %481 = vmatprep.subr.mxu0 0.0
    %482 = vmatpush1.msra.mxu0 %v180
    %483 = vmatprep.subr.mxu0 0.0
    %484 = vmatpush1.msra.mxu0 %v179
    %485 = vmatprep.subr.mxu0 0.0
    %486 = vmatpush1.msra.mxu0 %v178
    %487 = vmatprep.subr.mxu0 0.0
    %488 = vmatpush1.msra.mxu0 %v177
    %489 = vmatprep.subr.mxu0 0.0
    %490 = vmatpush1.msra.mxu0 %v176
    %491 = vmatprep.subr.mxu0 0.0
    %492 = vmatpush1.msra.mxu0 %v175
    %493 = vmatprep.subr.mxu0 0.0
    %494 = vmatpush1.msra.mxu0 %v174
    %495 = vmatprep.subr.mxu0 0.0
    %496 = vmatpush1.msra.mxu0 %v173
    %497 = vmatprep.subr.mxu0 0.0
    %498 = vmatpush2.msra.mxu0 0.0
    %499 = vmatprep.subr.mxu0 0.0
    %500 = vmatpush2.msra.mxu0 0.0
    %501 = vmatprep.subr.mxu0 0.0
    %502 = vmatpush2.msra.mxu0 0.0
    %503 = vmatprep.subr.mxu0 0.0
    %504 = vmatpush2.msra.mxu0 0.0
    %505 = vmatprep.subr.mxu0 0.0
    %506 = vmatpush2.msra.mxu0 0.0
    %507 = vmatprep.subr.mxu0 0.0
    %508 = vmatpush2.msra.mxu0 0.0
    %509 = vmatprep.subr.mxu0 0.0
    %510 = vmatpush2.msra.mxu0 0.0
    %511 = vmatprep.subr.mxu0 0.0
    %512 = vmatpush2.msra.mxu0 0.0
    %513 = vmatprep.subr.mxu0 0.0
    %514 = vmatpush2.msra.mxu0 0.0
    %515 = vmatprep.subr.mxu0 0.0
    %516 = vmatpush2.msra.mxu0 0.0
    %517 = vmatprep.subr.mxu0 0.0
    %518 = vmatpush2.msra.mxu0 0.0
    %519 = vmatprep.subr.mxu0 0.0
    %520 = vmatpush2.msra.mxu0 0.0
    %521 = vmatprep.subr.mxu0 0.0
    %522 = vmatpush2.msra.mxu0 0.0
    %523 = vmatprep.subr.mxu0 0.0
    %524 = vmatpush2.msra.mxu0 0.0
    %525 = vmatprep.subr.mxu0 0.0
    %526 = vmatpush2.msra.mxu0 0.0
    %527 = vmatprep.subr.mxu0 0.0
    %528 = vmatpush2.msra.mxu0 0.0
    %529 = vmatprep.mubr.f32.mxu0 0.0
    %530 = vmatmul.mubr.f32.gmra.mxu0 %v463
    %v531 = vpop.f32.mrf.mxu0
    %v532 = vadd.f32 0.0, %v531
    %v533 = vpop.f32.mrf.mxu0
    %534 = vdwg.mxu0
    %v535 = vmax.f32 %v532, 0.0
    %vm536 = vcmask 31744
    %v538 = vsel %vm536, %v535, 0
    %vm540 = vcmask 1043456
    %v542 = vsel %vm540, %v181, 0
    %544 = vmatprep.subr.mxu0 0.0
    %545 = vmatpush1.msra.mxu0 0.0
    %546 = vmatprep.subr.mxu0 0.0
    %547 = vmatpush1.msra.mxu0 0.0
    %548 = vmatprep.subr.mxu0 0.0
    %549 = vmatpush1.msra.mxu0 0.0
    %550 = vmatprep.subr.mxu0 0.0
    %551 = vmatpush1.msra.mxu0 0.0
    %552 = vmatprep.subr.mxu0 0.0
    %553 = vmatpush1.msra.mxu0 0.0
    %554 = vmatprep.subr.mxu0 0.0
    %555 = vmatpush1.msra.mxu0 0.0
    %556 = vmatprep.subr.mxu0 0.0
    %557 = vmatpush1.msra.mxu0 0.0
    %558 = vmatprep.subr.mxu0 0.0
    %559 = vmatpush1.msra.mxu0 0.0
    %560 = vmatprep.subr.mxu0 0.0
    %561 = vmatpush1.msra.mxu0 0.0
    %562 = vmatprep.subr.mxu0 0.0
    %563 = vmatpush1.msra.mxu0 0.0
    %564 = vmatprep.subr.mxu0 0.0
    %565 = vmatpush1.msra.mxu0 0.0
    %566 = vmatprep.subr.mxu0 0.0
    %567 = vmatpush1.msra.mxu0 0.0
    %568 = vmatprep.subr.mxu0 0.0
    %569 = vmatpush1.msra.mxu0 0.0
    %570 = vmatprep.subr.mxu0 0.0
    %571 = vmatpush1.msra.mxu0 0.0
    %572 = vmatprep.subr.mxu0 0.0
    %573 = vmatpush1.msra.mxu0 0.0
    %574 = vmatprep.subr.mxu0 0.0
    %575 = vmatpush1.msra.mxu0 %v542
    %576 = vmatprep.subr.mxu0 0.0
    %577 = vmatpush2.msra.mxu0 0.0
    %578 = vmatprep.subr.mxu0 0.0
    %579 = vmatpush2.msra.mxu0 0.0
    %580 = vmatprep.subr.mxu0 0.0
    %581 = vmatpush2.msra.mxu0 0.0
    %582 = vmatprep.subr.mxu0 0.0
    %583 = vmatpush2.msra.mxu0 0.0
    %584 = vmatprep.subr.mxu0 0.0
    %585 = vmatpush2.msra.mxu0 0.0
    %586 = vmatprep.subr.mxu0 0.0
    %587 = vmatpush2.msra.mxu0 0.0
    %588 = vmatprep.subr.mxu0 0.0
    %589 = vmatpush2.msra.mxu0 0.0
    %590 = vmatprep.subr.mxu0 0.0
    %591 = vmatpush2.msra.mxu0 0.0
    %592 = vmatprep.subr.mxu0 0.0
    %593 = vmatpush2.msra.mxu0 0.0
    %594 = vmatprep.subr.mxu0 0.0
    %595 = vmatpush2.msra.mxu0 0.0
    %596 = vmatprep.subr.mxu0 0.0
    %597 = vmatpush2.msra.mxu0 0.0
    %598 = vmatprep.subr.mxu0 0.0
    %599 = vmatpush2.msra.mxu0 0.0
    %600 = vmatprep.subr.mxu0 0.0
    %601 = vmatpush2.msra.mxu0 0.0
    %602 = vmatprep.subr.mxu0 0.0
    %603 = vmatpush2.msra.mxu0 0.0
    %604 = vmatprep.subr.mxu0 0.0
    %605 = vmatpush2.msra.mxu0 0.0
    %606 = vmatprep.subr.mxu0 0.0
    %607 = vmatpush2.msra.mxu0 0.0
    %608 = vmatprep.mubr.f32.mxu0 0.0
    %609 = vmatmul.mubr.f32.gmra.mxu0 %v538
    %v610 = vpop.f32.mrf.mxu0
    %v611 = vadd.f32 0.0, %v610
    %v612 = vpop.f32.mrf.mxu0
    %613 = vdwg.mxu0
    %v615 = vsel %vm536, %v367, 0
    %617 = vmatprep.subr.mxu0 0.0
    %618 = vmatpush1.msra.mxu0 0.0
    %619 = vmatprep.subr.mxu0 0.0
    %620 = vmatpush1.msra.mxu0 0.0
    %621 = vmatprep.subr.mxu0 0.0
    %622 = vmatpush1.msra.mxu0 0.0
    %623 = vmatprep.subr.mxu0 0.0
    %624 = vmatpush1.msra.mxu0 0.0
    %625 = vmatprep.subr.mxu0 0.0
    %626 = vmatpush1.msra.mxu0 0.0
    %627 = vmatprep.subr.mxu0 0.0
    %628 = vmatpush1.msra.mxu0 0.0
    %629 = vmatprep.subr.mxu0 0.0
    %630 = vmatpush1.msra.mxu0 0.0
    %631 = vmatprep.subr.mxu0 0.0
    %632 = vmatpush1.msra.mxu0 0.0
    %633 = vmatprep.subr.mxu0 0.0
    %634 = vmatpush1.msra.mxu0 0.0
    %635 = vmatprep.subr.mxu0 0.0
    %636 = vmatpush1.msra.mxu0 0.0
    %637 = vmatprep.subr.mxu0 0.0
    %638 = vmatpush1.msra.mxu0 0.0
    %639 = vmatprep.subr.mxu0 0.0
    %640 = vmatpush1.msra.mxu0 0.0
    %641 = vmatprep.subr.mxu0 0.0
    %642 = vmatpush1.msra.mxu0 0.0
    %643 = vmatprep.subr.mxu0 0.0
    %644 = vmatpush1.msra.mxu0 0.0
    %645 = vmatprep.subr.mxu0 0.0
    %646 = vmatpush1.msra.mxu0 0.0
    %647 = vmatprep.subr.mxu0 0.0
    %648 = vmatpush1.msra.mxu0 %v542
    %649 = vmatprep.subr.mxu0 0.0
    %650 = vmatpush2.msra.mxu0 0.0
    %651 = vmatprep.subr.mxu0 0.0
    %652 = vmatpush2.msra.mxu0 0.0
    %653 = vmatprep.subr.mxu0 0.0
    %654 = vmatpush2.msra.mxu0 0.0
    %655 = vmatprep.subr.mxu0 0.0
    %656 = vmatpush2.msra.mxu0 0.0
    %657 = vmatprep.subr.mxu0 0.0
    %658 = vmatpush2.msra.mxu0 0.0
    %659 = vmatprep.subr.mxu0 0.0
    %660 = vmatpush2.msra.mxu0 0.0
    %661 = vmatprep.subr.mxu0 0.0
    %662 = vmatpush2.msra.mxu0 0.0
    %663 = vmatprep.subr.mxu0 0.0
    %664 = vmatpush2.msra.mxu0 0.0
    %665 = vmatprep.subr.mxu0 0.0
    %666 = vmatpush2.msra.mxu0 0.0
    %667 = vmatprep.subr.mxu0 0.0
    %668 = vmatpush2.msra.mxu0 0.0
    %669 = vmatprep.subr.mxu0 0.0
    %670 = vmatpush2.msra.mxu0 0.0
    %671 = vmatprep.subr.mxu0 0.0
    %672 = vmatpush2.msra.mxu0 0.0
    %673 = vmatprep.subr.mxu0 0.0
    %674 = vmatpush2.msra.mxu0 0.0
    %675 = vmatprep.subr.mxu0 0.0
    %676 = vmatpush2.msra.mxu0 0.0
    %677 = vmatprep.subr.mxu0 0.0
    %678 = vmatpush2.msra.mxu0 0.0
    %679 = vmatprep.subr.mxu0 0.0
    %680 = vmatpush2.msra.mxu0 0.0
    %681 = vmatprep.mubr.f32.mxu0 0.0
    %682 = vmatmul.mubr.f32.gmra.mxu0 %v615
    %v683 = vpop.f32.mrf.mxu0
    %v684 = vadd.f32 %v611, %v683
    %v685 = vpop.f32.mrf.mxu0
    %686 = vdwg.mxu0
    %v687 = vxor.u32 %v684, 2147483648
    %v688 = vmul.f32 %v687, 1.442695
    %v689 = vpow.pop %v688
    %v690 = vadd.f32 %v689, 1.0
    %v691 = vrcp.pop %v690
    %v692 = vmul.f32 1.0, %v691
    %v693 = vlaneseq
    %v694 = vshrl.u32 %v693, 7
    %v695 = vsub.s32 0, %v694
    %v696 = vrot.slane %v692, %v695
    %698 = vbcast.lane.b32.xlu0 %v696, 256
    %v699 = vpop.permute.xlu0 %698
    %s701 = sor.u32 256, 8
    %702 = vbcast.lane.b32.xlu0 %v696, %s701
    %v703 = vpop.permute.xlu0 %702
    %s705 = sor.u32 256, 16
    %706 = vbcast.lane.b32.xlu0 %v696, %s705
    %v707 = vpop.permute.xlu0 %706
    %s709 = sor.u32 256, 24
    %710 = vbcast.lane.b32.xlu0 %v696, %s709
    %v711 = vpop.permute.xlu0 %710
    %s713 = sor.u32 256, 32
    %714 = vbcast.lane.b32.xlu0 %v696, %s713
    %v715 = vpop.permute.xlu0 %714
    %s717 = sor.u32 256, 40
    %718 = vbcast.lane.b32.xlu0 %v696, %s717
    %v719 = vpop.permute.xlu0 %718
    %s721 = sor.u32 256, 48
    %722 = vbcast.lane.b32.xlu0 %v696, %s721
    %v723 = vpop.permute.xlu0 %722
    %s725 = sor.u32 256, 56
    %726 = vbcast.lane.b32.xlu0 %v696, %s725
    %v727 = vpop.permute.xlu0 %726
    %v728 = vlaneseq
    %v729 = vshrl.u32 %v728, 7
    %v730 = vsub.s32 1, %v729
    %v731 = vrot.slane %v692, %v730
    %733 = vbcast.lane.b32.xlu0 %v731, 256
    %v734 = vpop.permute.xlu0 %733
    %s736 = sor.u32 256, 8
    %737 = vbcast.lane.b32.xlu0 %v731, %s736
    %v738 = vpop.permute.xlu0 %737
    %s740 = sor.u32 256, 16
    %741 = vbcast.lane.b32.xlu0 %v731, %s740
    %v742 = vpop.permute.xlu0 %741
    %s744 = sor.u32 256, 24
    %745 = vbcast.lane.b32.xlu0 %v731, %s744
    %v746 = vpop.permute.xlu0 %745
    %s748 = sor.u32 256, 32
    %749 = vbcast.lane.b32.xlu0 %v731, %s748
    %v750 = vpop.permute.xlu0 %749
    %s752 = sor.u32 256, 40
    %753 = vbcast.lane.b32.xlu0 %v731, %s752
    %v754 = vpop.permute.xlu0 %753
    %s756 = sor.u32 256, 48
    %757 = vbcast.lane.b32.xlu0 %v731, %s756
    %v758 = vpop.permute.xlu0 %757
    %s760 = sor.u32 256, 56
    %761 = vbcast.lane.b32.xlu0 %v731, %s760
    %v762 = vpop.permute.xlu0 %761
    %v763 = vmul.f32 %v29, %v699
    %v764 = vmul.f32 %v30, %v699
    %v765 = vmul.f32 %v31, %v703
    %v766 = vmul.f32 %v32, %v703
    %v767 = vmul.f32 %v33, %v707
    %v768 = vmul.f32 %v34, %v707
    %v769 = vmul.f32 %v35, %v711
    %v770 = vmul.f32 %v36, %v711
    %v771 = vmul.f32 %v37, %v715
    %v772 = vmul.f32 %v38, %v715
    %v773 = vmul.f32 %v39, %v719
    %v774 = vmul.f32 %v40, %v719
    %v775 = vmul.f32 %v41, %v723
    %v776 = vmul.f32 %v42, %v723
    %v777 = vmul.f32 %v43, %v727
    %v778 = vmul.f32 %v44, %v727
    %v779 = vmul.f32 %v45, %v734
    %v780 = vmul.f32 %v46, %v734
    %v781 = vmul.f32 %v47, %v738
    %v782 = vmul.f32 %v48, %v738
    %v783 = vmul.f32 %v49, %v742
    %v784 = vmul.f32 %v50, %v742
    %v785 = vmul.f32 %v51, %v746
    %v786 = vmul.f32 %v52, %v746
    %v787 = vmul.f32 %v53, %v750
    %v788 = vmul.f32 %v54, %v750
    %v789 = vmul.f32 %v55, %v754
    %v790 = vmul.f32 %v56, %v754
    %v791 = vmul.f32 %v57, %v758
    %v792 = vmul.f32 %v58, %v758
    %v793 = vmul.f32 %v59, %v762
    %v794 = vmul.f32 %v60, %v762
    %795 = vst [vmem:[#allocation5] sm:$0xff] %v763
    %796 = vst [vmem:[#allocation5 + $0x8] sm:$0xff] %v764
    %797 = vst [vmem:[#allocation5 + $0x10] sm:$0xff] %v765
    %798 = vst [vmem:[#allocation5 + $0x18] sm:$0xff] %v766
    %799 = vst [vmem:[#allocation5 + $0x20] sm:$0xff] %v767
    %800 = vst [vmem:[#allocation5 + $0x28] sm:$0xff] %v768
    %801 = vst [vmem:[#allocation5 + $0x30] sm:$0xff] %v769
    %802 = vst [vmem:[#allocation5 + $0x38] sm:$0xff] %v770
    %803 = vst [vmem:[#allocation5 + $0x40] sm:$0xff] %v771
    %804 = vst [vmem:[#allocation5 + $0x48] sm:$0xff] %v772
    %805 = vst [vmem:[#allocation5 + $0x50] sm:$0xff] %v773
    %806 = vst [vmem:[#allocation5 + $0x58] sm:$0xff] %v774
    %807 = vst [vmem:[#allocation5 + $0x60] sm:$0xff] %v775
    %808 = vst [vmem:[#allocation5 + $0x68] sm:$0xff] %v776
    %809 = vst [vmem:[#allocation5 + $0x70] sm:$0xff] %v777
    %810 = vst [vmem:[#allocation5 + $0x78] sm:$0xff] %v778
    %811 = vst [vmem:[#allocation5 + $0x80] sm:$0xff] %v779
    %812 = vst [vmem:[#allocation5 + $0x88] sm:$0xff] %v780
    %813 = vst [vmem:[#allocation5 + $0x90] sm:$0xff] %v781
    %814 = vst [vmem:[#allocation5 + $0x98] sm:$0xff] %v782
    %815 = vst [vmem:[#allocation5 + $0xa0] sm:$0xff] %v783
    %816 = vst [vmem:[#allocation5 + $0xa8] sm:$0xff] %v784
    %817 = vst [vmem:[#allocation5 + $0xb0] sm:$0xff] %v785
    %818 = vst [vmem:[#allocation5 + $0xb8] sm:$0xff] %v786
    %819 = vst [vmem:[#allocation5 + $0xc0] sm:$0xff] %v787
    %820 = vst [vmem:[#allocation5 + $0xc8] sm:$0xff] %v788
    %821 = vst [vmem:[#allocation5 + $0xd0] sm:$0xff] %v789
    %822 = vst [vmem:[#allocation5 + $0xd8] sm:$0xff] %v790
    %823 = vst [vmem:[#allocation5 + $0xe0] sm:$0xff] %v791
    %824 = vst [vmem:[#allocation5 + $0xe8] sm:$0xff] %v792
    %825 = vst [vmem:[#allocation5 + $0xf0] sm:$0xff] %v793
    %826 = vst [vmem:[#allocation5 + $0xf8] sm:$0xff] %v794
    // Predicated region
    $region18: #{tpu_custom_call.1} parent=1 // pred_check
      _
    $region19: #{tpu_custom_call.1} parent=1 // pred_check_branch
      %828 = sbr.rel (0) target = $region21
    $region20: #{tpu_custom_call.1} parent=1 // pred_region
      %s830 = ssub.s32 4096, 4096
      %831 = vsyncadd [#allocation4], %s830
      %s832 = sshll.u32 [#allocation5], 4
      %s833 = int_to_ptr.vmem [resolvable:$true] %s832
      %838 = dma.vmem_to_hbm [thread:$0]  %s833, 4096, %s3, [#allocation4], 256, 256, 16
    $region21: #{tpu_custom_call.1} parent=1 // pred_fallthru
      _
    // Predicated region
    $region22: #{tpu_custom_call.1} parent=1 // pred_check
      _
    $region23: #{tpu_custom_call.1} parent=1 // pred_check_branch
      %840 = sbr.rel (0) target = $region25
    $region24: #{tpu_custom_call.1} parent=1 // pred_region
      %841 = dma.done [#allocation4], 4096
    $region25: #{tpu_custom_call.1} parent=1 // pred_fallthru
      _
    %842 = vsyncpa [#allocation3], 1
    %843 = vsyncpa [#allocation4], 1

</llo_original>
